<compile_context>
chip_gen: v5e
topology: v5e:2x2
jax: 0.10.0
libtpu: 0.0.40
codegen_flags: <defaults>
</compile_context>

<pallas_src>
import functools
from typing import List, Optional, Union

import jax
import jax.numpy as jnp
from jax.experimental import pallas as pl
from jax.experimental.pallas import tpu as pltpu

_TARGET_BLOCK_BYTES = 2 * 1024 * 1024   # per-stream block: ~86% of HBM roofline


def _round_up(x: int, m: int) -> int:
    return ((x + m - 1) // m) * m


def _vmem_budgets():
    """Generation-aware (tile_budget_bytes, scoped_vmem_limit_bytes)."""
    cap = 64 * 1024 * 1024                       # conservative fallback (v7x-sized)
    try:
        cap = int(pltpu.get_tpu_info().vmem_capacity_bytes)
    except Exception:
        pass
    if cap >= 96 * 1024 * 1024:                  # v5e / v6e: 128 MiB physical VMEM
        return 28 * 1024 * 1024, 64 * 1024 * 1024
    return 20 * 1024 * 1024, 44 * 1024 * 1024    # v7x: 64 MiB physical VMEM


def _focal_weight(one_minus_pt, gamma: float):
    """(1 - pt) ** gamma; small integer gamma -> repeated VPU multiplies."""
    g = float(gamma)
    if g == 0.0:
        return jnp.ones_like(one_minus_pt)
    if g == int(g) and 1.0 <= g <= 16.0:
        n = int(g)
        result = None
        base = one_minus_pt
        while True:
            if n & 1:
                result = base if result is None else result * base
            n >>= 1
            if n == 0:
                break
            base = base * base
        return result
    return jnp.power(one_minus_pt, g)            # non-integer gamma: EUP log+exp


def _tile_loss(x, t, alpha_rows, *, gamma, n_rows, block_rows, ragged):
    """Element-wise focal loss on one (tn, C) tile, computed in f32.

    Uses exactly the reference formulation (stable BCE-with-logits + sigmoid),
    so it is also correct for soft / non-binary targets.  The single exp(-|x|)
    is shared between the BCE log1p term and the sigmoid.
    """
    x = x.astype(jnp.float32)
    t = t.astype(jnp.float32)

    e = jnp.exp(-jnp.abs(x))                                 # EUP
    bce = jnp.maximum(x, 0.0) - x * t + jnp.log1p(e)         # BCE with logits
    r = 1.0 / (1.0 + e)                                      # EUP divide
    er = e * r
    xpos = x >= 0.0
    p = jnp.where(xpos, r, er)                               # sigmoid(x)
    one_minus_p = jnp.where(xpos, er, r)                     # 1 - sigmoid(x)

    t_is_one = t == 1.0
    one_minus_pt = jnp.where(t_is_one, one_minus_p, p)       # 1 - pt
    fl = _focal_weight(one_minus_pt, gamma) * bce

    if alpha_rows is not None:
        a_pos = jnp.broadcast_to(alpha_rows[0:1, :], t.shape)    # alpha
        a_neg = jnp.broadcast_to(alpha_rows[1:2, :], t.shape)    # 1 - alpha
        fl = jnp.where(t_is_one, a_pos, a_neg) * fl

    if ragged:
        # Rows past N in the last (partial) tile hold garbage — zero them.
        rid = (jax.lax.broadcasted_iota(jnp.int32, fl.shape, 0)
               + pl.program_id(0) * block_rows)
        fl = jnp.where(rid < n_rows, fl, 0.0)
    return fl


# ----------------------- 'mean' / 'sum': parallel per-tile partials -----------------------

def _partial_sum_kernel(x_ref, t_ref, out_ref, *, gamma, n_rows, block_rows, ragged):
    fl = _tile_loss(x_ref[...], t_ref[...], None, gamma=gamma,
                    n_rows=n_rows, block_rows=block_rows, ragged=ragged)
    out_ref[...] = jnp.broadcast_to(jnp.sum(fl), out_ref.shape)


def _partial_sum_alpha_kernel(x_ref, t_ref, a_ref, out_ref, *, gamma, n_rows,
                              block_rows, ragged):
    fl = _tile_loss(x_ref[...], t_ref[...], a_ref[...], gamma=gamma,
                    n_rows=n_rows, block_rows=block_rows, ragged=ragged)
    out_ref[...] = jnp.broadcast_to(jnp.sum(fl), out_ref.shape)


# ----------------------------- 'none': per-element output -----------------------------

def _none_kernel(x_ref, t_ref, out_ref, *, gamma):
    fl = _tile_loss(x_ref[...], t_ref[...], None, gamma=gamma,
                    n_rows=0, block_rows=0, ragged=False)
    out_ref[...] = fl.astype(out_ref.dtype)


def _none_alpha_kernel(x_ref, t_ref, a_ref, out_ref, *, gamma):
    fl = _tile_loss(x_ref[...], t_ref[...], a_ref[...], gamma=gamma,
                    n_rows=0, block_rows=0, ragged=False)
    out_ref[...] = fl.astype(out_ref.dtype)


# --------------------------------------- wrapper ---------------------------------------

class FocalLossPallas:
    """Pallas TPU implementation of the PyTorch FocalLoss module."""

    def __init__(self,
                 gamma: float = 2.0,
                 alpha: Optional[Union[float, List[float], jnp.ndarray]] = None,
                 reduction: str = "mean"):
        self.gamma = float(gamma)
        self.alpha = alpha
        self.reduction = reduction

    def _alpha_rows(self, C: int) -> Optional[jnp.ndarray]:
        if self.alpha is None:
            return None
        if isinstance(self.alpha, (float, int)):
            a = jnp.full((C,), float(self.alpha), dtype=jnp.float32)
        else:
            a = jnp.asarray(self.alpha, dtype=jnp.float32).reshape(C)
        return jnp.stack([a, 1.0 - a], axis=0)   # (2, C): [alpha ; 1-alpha]

    def __call__(self, logits: jnp.ndarray, targets: jnp.ndarray) -> jnp.ndarray:
        if self.reduction not in ("mean", "sum", "none"):
            raise ValueError(f"unknown reduction {self.reduction!r}")
        N, C = logits.shape
        tile_budget, vmem_limit = _vmem_budgets()

        # ---- byte-based row-tile sizing; no host-side padding of x / t ----
        c_lane = _round_up(C, 128)                       # VMEM lane footprint per row
        bx = jnp.dtype(logits.dtype).itemsize
        bt = jnp.dtype(targets.dtype).itemsize
        bo = jnp.dtype(logits.dtype).itemsize if self.reduction == "none" else 0

        min_item = min(b for b in (bx, bt, bo) if b > 0)
        sub_align = max(8, 32 // min_item)               # 8 (f32) / 16 (bf16) / 32 (i8)

        row_bytes = c_lane * (bx + bt + bo)              # all streams, one row
        tn_budget = tile_budget // (2 * row_bytes)       # all streams double-buffered
        tn_target = _TARGET_BLOCK_BYTES // (c_lane * max(bx, bt, bo, 1))
        tn = min(tn_budget, tn_target, _round_up(N, sub_align))
        tn = max(sub_align, (tn // sub_align) * sub_align)
        grid_n = pl.cdiv(N, tn)
        ragged = (N % tn) != 0
        # TODO(synk): 2-D (row x column) tiling for extremely wide C where even an
        #             8-row block would exceed the VMEM tile budget.

        x_spec = pl.BlockSpec((tn, C), lambda i: (i, 0))
        t_spec = pl.BlockSpec((tn, C), lambda i: (i, 0))
        a_spec = pl.BlockSpec((2, C), lambda i: (0, 0))
        alpha_rows = self._alpha_rows(C)

        cparams = pltpu.CompilerParams(
            dimension_semantics=("parallel",),           # megacore-shardable on v7x
            vmem_limit_bytes=vmem_limit)

        if self.reduction in ("mean", "sum"):
            common = dict(gamma=self.gamma, n_rows=N, block_rows=tn, ragged=ragged)
            if alpha_rows is None:
                kernel = functools.partial(_partial_sum_kernel, **common)
                in_specs, args = [x_spec, t_spec], (logits, targets)
            else:
                kernel = functools.partial(_partial_sum_alpha_kernel, **common)
                in_specs, args = [x_spec, t_spec, a_spec], (logits, targets, alpha_rows)

            partials = pl.pallas_call(
                kernel,
                out_shape=jax.ShapeDtypeStruct((grid_n, 8, 128), jnp.float32),
                grid_spec=pltpu.PrefetchScalarGridSpec(
                    num_scalar_prefetch=0,
                    grid=(grid_n,),
                    in_specs=in_specs,
                    out_specs=pl.BlockSpec((1, 8, 128), lambda i: (i, 0, 0))),
                compiler_params=cparams,
            )(*args)
            total = partials[:, 0, 0].sum()              # tiny final reduce outside
            if self.reduction == "mean":
                total = total / float(N * C)
            return total

        # reduction == "none" — output in the logits dtype, no padding, no slice.
        if alpha_rows is None:
            kernel = functools.partial(_none_kernel, gamma=self.gamma)
            in_specs, args = [x_spec, t_spec], (logits, targets)
        else:
            kernel = functools.partial(_none_alpha_kernel, gamma=self.gamma)
            in_specs, args = [x_spec, t_spec, a_spec], (logits, targets, alpha_rows)

        out = pl.pallas_call(
            kernel,
            out_shape=jax.ShapeDtypeStruct((N, C), logits.dtype),
            grid_spec=pltpu.PrefetchScalarGridSpec(
                num_scalar_prefetch=0,
                grid=(grid_n,),
                in_specs=in_specs,
                out_specs=pl.BlockSpec((tn, C), lambda i: (i, 0))),
            compiler_params=cparams,
        )(*args)
        return out


# --------------------------------------- reference ---------------------------------------

def focal_loss_ref(logits, targets, gamma=2.0, alpha=None, reduction="mean"):
    """Direct JAX translation of the PyTorch module (source of truth)."""
    x = logits.astype(jnp.float32)
    t = targets.astype(jnp.float32)
    bce = jnp.maximum(x, 0.0) - x * t + jnp.log1p(jnp.exp(-jnp.abs(x)))
    p = jax.nn.sigmoid(x)
    pt = jnp.where(t == 1.0, p, 1.0 - p)
    fl = jnp.power(1.0 - pt, gamma) * bce
    if alpha is not None:
        if isinstance(alpha, (float, int)):
            a = jnp.full_like(t, float(alpha))
        else:
            a = jnp.broadcast_to(jnp.asarray(alpha, jnp.float32).reshape(1, -1), t.shape)
        fl = jnp.where(t == 1.0, a, 1.0 - a) * fl
    if reduction == "mean":
        return fl.mean()
    if reduction == "sum":
        return fl.sum()
    return fl


if __name__ == "__main__":
    key = jax.random.PRNGKey(0)
    k1, k2, k3, k4 = jax.random.split(key, 4)
    ok = True

    # Case 1: default config (gamma=2.0, alpha=None, 'mean'), N=16, C=32
    N, C = 16, 32
    logits = jax.random.normal(k1, (N, C), dtype=jnp.float32) * 2.0
    targets = (jax.random.uniform(k2, (N, C)) > 0.5).astype(jnp.float32)

    loss_fn = FocalLossPallas(gamma=2.0, alpha=None, reduction="mean")
    out = jax.block_until_ready(loss_fn(logits, targets))
    ref = focal_loss_ref(logits, targets, gamma=2.0, alpha=None, reduction="mean")
    ok &= bool(jnp.allclose(out, ref, rtol=1e-5, atol=1e-5))

    # Case 2: per-class alpha + 'sum'
    alpha = [0.25] * C
    loss_fn2 = FocalLossPallas(gamma=2.0, alpha=alpha, reduction="sum")
    out2 = jax.block_until_ready(loss_fn2(logits, targets))
    ref2 = focal_loss_ref(logits, targets, gamma=2.0, alpha=alpha, reduction="sum")
    ok &= bool(jnp.allclose(out2, ref2, rtol=1e-5, atol=1e-5))

    # Case 3: scalar alpha + reduction='none'
    loss_fn3 = FocalLossPallas(gamma=2.0, alpha=0.5, reduction="none")
    out3 = jax.block_until_ready(loss_fn3(logits, targets))
    ref3 = focal_loss_ref(logits, targets, gamma=2.0, alpha=0.5, reduction="none")
    ok &= bool(jnp.allclose(out3, ref3, rtol=1e-5, atol=1e-5))

    # Case 4: non-aligned shapes (ragged rows, C not a multiple of 128) + non-integer gamma
    N2, C2 = 10, 40
    logits2 = jax.random.normal(k3, (N2, C2), dtype=jnp.float32) * 2.0
    targets2 = (jax.random.uniform(k4, (N2, C2)) > 0.5).astype(jnp.float32)
    loss_fn4 = FocalLossPallas(gamma=1.5, alpha=None, reduction="mean")
    out4 = jax.block_until_ready(loss_fn4(logits2, targets2))
    ref4 = focal_loss_ref(logits2, targets2, gamma=1.5, alpha=None, reduction="mean")
    ok &= bool(jnp.allclose(out4, ref4, rtol=1e-5, atol=1e-5))

    if ok:
        print("KERNEL_OK")
    else:
        print("MISMATCH")
</pallas_src>

<mosaic_0001>
module attributes {stable_mosaic.version = 11 : i64} {
  func.func @_partial_sum_kernel(%arg0: i32, %arg1: memref<16x32xf32, #tpu.memory_space<vmem>>, %arg2: memref<16x32xf32, #tpu.memory_space<vmem>>, %arg3: memref<1x8x128xf32, #tpu.memory_space<vmem>>) attributes {dimension_semantics = [#tpu.dimension_semantics<parallel>], iteration_bounds = array<i64: 1>, scalar_prefetch = 0 : i64, scratch_operands = 0 : i64, tpu.core_type = #tpu.core_type<tc>, window_params = [{transform_indices = @transform_0, window_bounds = array<i64: 16, 32>}, {transform_indices = @transform_1, window_bounds = array<i64: 16, 32>}, {transform_indices = @transform_2, window_bounds = array<i64: 1, 8, 128>}]} {
    %c0 = arith.constant 0 : index
    %c0_0 = arith.constant 0 : index
    %0 = vector.load %arg1[%c0, %c0_0] : memref<16x32xf32, #tpu.memory_space<vmem>>, vector<16x32xf32>
    %c0_1 = arith.constant 0 : index
    %c0_2 = arith.constant 0 : index
    %1 = vector.load %arg2[%c0_1, %c0_2] : memref<16x32xf32, #tpu.memory_space<vmem>>, vector<16x32xf32>
    %2 = math.absf %0 : vector<16x32xf32>
    %cst = arith.constant 0.000000e+00 : f32
    %3 = vector.broadcast %cst : f32 to vector<16x32xf32>
    %4 = arith.subf %3, %2 : vector<16x32xf32>
    %5 = math.exp %4 : vector<16x32xf32>
    %cst_3 = arith.constant 0.000000e+00 : f32
    %6 = vector.broadcast %cst_3 : f32 to vector<16x32xf32>
    %7 = arith.maximumf %0, %6 : vector<16x32xf32>
    %8 = arith.mulf %0, %1 : vector<16x32xf32>
    %9 = arith.subf %7, %8 : vector<16x32xf32>
    %10 = math.log1p %5 : vector<16x32xf32>
    %11 = arith.addf %9, %10 : vector<16x32xf32>
    %cst_4 = arith.constant 1.000000e+00 : f32
    %12 = vector.broadcast %cst_4 : f32 to vector<16x32xf32>
    %13 = arith.addf %12, %5 : vector<16x32xf32>
    %cst_5 = arith.constant 1.000000e+00 : f32
    %14 = vector.broadcast %cst_5 : f32 to vector<16x32xf32>
    %15 = arith.divf %14, %13 : vector<16x32xf32>
    %16 = arith.mulf %5, %15 : vector<16x32xf32>
    %cst_6 = arith.constant 0.000000e+00 : f32
    %17 = vector.broadcast %cst_6 : f32 to vector<16x32xf32>
    %18 = arith.cmpf oge, %0, %17 : vector<16x32xf32>
    %19 = arith.select %18, %15, %16 : vector<16x32xi1>, vector<16x32xf32>
    %20 = arith.select %18, %16, %15 : vector<16x32xi1>, vector<16x32xf32>
    %cst_7 = arith.constant 1.000000e+00 : f32
    %21 = vector.broadcast %cst_7 : f32 to vector<16x32xf32>
    %22 = arith.cmpf oeq, %1, %21 : vector<16x32xf32>
    %23 = arith.select %22, %20, %19 : vector<16x32xi1>, vector<16x32xf32>
    %24 = arith.mulf %23, %23 : vector<16x32xf32>
    %25 = arith.mulf %24, %11 : vector<16x32xf32>
    %26 = vector.shape_cast %25 : vector<16x32xf32> to vector<1x16x32xf32>
    %cst_8 = arith.constant dense<0.000000e+00> : vector<1xf32>
    %27 = vector.multi_reduction <add>, %26, %cst_8 [1, 2] : vector<1x16x32xf32> to vector<1xf32>
    %28 = vector.shape_cast %27 : vector<1xf32> to vector<1x1x1xf32>
    %29 = vector.extract %28[0, 0, 0] : f32 from vector<1x1x1xf32>
    %30 = vector.broadcast %29 : f32 to vector<1x8x128xf32>
    %c0_9 = arith.constant 0 : index
    %c0_10 = arith.constant 0 : index
    %c0_11 = arith.constant 0 : index
    %31 = vector.load %arg3[%c0_9, %c0_10, %c0_11] : memref<1x8x128xf32, #tpu.memory_space<vmem>>, vector<1x8x128xf32>
    tpu.vector_store %arg3[%c0_9, %c0_10, %c0_11], %30 {strides = array<i32>} : memref<1x8x128xf32, #tpu.memory_space<vmem>>, vector<1x8x128xf32>,
    return
  }
  func.func @transform_0(%arg0: i32) -> (i32, i32) {
    %c0_i32 = arith.constant 0 : i32
    %c0_i32_0 = arith.constant 0 : i32
    return %arg0, %c0_i32 : i32, i32
  }
  func.func @transform_1(%arg0: i32) -> (i32, i32) {
    %c0_i32 = arith.constant 0 : i32
    %c0_i32_0 = arith.constant 0 : i32
    return %arg0, %c0_i32 : i32, i32
  }
  func.func @transform_2(%arg0: i32) -> (i32, i32, i32) {
    %c0_i32 = arith.constant 0 : i32
    %c0_i32_0 = arith.constant 0 : i32
    %c0_i32_1 = arith.constant 0 : i32
    return %arg0, %c0_i32, %c0_i32_0 : i32, i32, i32
  }
}

</mosaic_0001>

<llo_original>
// kernel: tpu_custom_call.1
$region0: #{tpu_custom_call.1}
  #allocation0 [shape = 'u32[]', space=smem, size = 0x4, offset = 0x4, fixed_abs, tag = 'smem constant byte address 0x4 - core index']
  #allocation1 [shape = 'u32[72,128]{1,0:T(1,128)}', space=vmem, size = 0x9000, scoped, tag = 'internal scratch']
  %s0 = inlined_call_operand.hbm [shape: f32[16,32], index: 0, kind: input, shape index: {}]
  %s1 = inlined_call_operand.hbm [shape: f32[16,32], index: 1, kind: input, shape index: {}]
  %s2 = inlined_call_operand.hbm [shape: f32[1,8,128], index: 2, kind: output, shape index: {}]
  %s3 = sld [smem:[#allocation0]]
  $region26: #{tpu_custom_call.1} parent=0
    _
  %s5 = ssub.s32 1, %s3
  %s6 = scalar_select 0, %s5, %s3
  $region1: #{tpu_custom_call.1} parent=0
    #allocation2 [shape = 'u8[8192]{0}', space=vmem, size = 0x2000, scoped, tag = 'input window, operand 0, single buffered']
    #allocation3 [shape = 's32[1]{0}', space=sflag, size = 0x4, scoped, tag = 'scoped memory for tpu_custom_call.1']
    #allocation4 [shape = 's32[1]{0}', space=sflag, size = 0x4, scoped, tag = 'scoped memory for tpu_custom_call.1']
    #allocation5 [shape = 'u8[8192]{0}', space=vmem, size = 0x2000, scoped, tag = 'input window, operand 1, single buffered']
    #allocation6 [shape = 's32[1]{0}', space=sflag, size = 0x4, scoped, tag = 'scoped memory for tpu_custom_call.1']
    #allocation7 [shape = 'u8[4096]{0}', space=vmem, size = 0x1000, scoped, tag = 'output window, operand 0, single buffered']
    %7 = vsyncpa [#allocation3], 0
    %8 = vsyncpa [#allocation6], 0
    %9 = vsyncpa [#allocation4], 0
    // Predicated region
    $region2: #{tpu_custom_call.1} parent=1 // pred_check
      _
    $region3: #{tpu_custom_call.1} parent=1 // pred_check_branch
      %11 = sbr.rel (0) target = $region5
    $region4: #{tpu_custom_call.1} parent=1 // pred_region
      %13 = vsyncadd [#allocation3], 0
      %s14 = sshll.u32 %s0, 4
      %s15 = int_to_ptr.hbm [resolvable:$true] %s14
      %s16 = sshll.u32 [#allocation2], 4
      %s17 = int_to_ptr.vmem [resolvable:$true] %s16
      %22 = dma.hbm_to_vmem [thread:$0]  %s15, 256, %s17, [#allocation3], 128, 128, 8
    $region5: #{tpu_custom_call.1} parent=1 // pred_fallthru
      _
    // Predicated region
    $region6: #{tpu_custom_call.1} parent=1 // pred_check
      _
    $region7: #{tpu_custom_call.1} parent=1 // pred_check_branch
      %24 = sbr.rel (0) target = $region9
    $region8: #{tpu_custom_call.1} parent=1 // pred_region
      %26 = vsyncadd [#allocation6], 0
      %s27 = sshll.u32 %s1, 4
      %s28 = int_to_ptr.hbm [resolvable:$true] %s27
      %s29 = sshll.u32 [#allocation5], 4
      %s30 = int_to_ptr.vmem [resolvable:$true] %s29
      %35 = dma.hbm_to_vmem [thread:$0]  %s28, 256, %s30, [#allocation6], 128, 128, 8
    $region9: #{tpu_custom_call.1} parent=1 // pred_fallthru
      _
    // Predicated region
    $region10: #{tpu_custom_call.1} parent=1 // pred_check
      _
    $region11: #{tpu_custom_call.1} parent=1 // pred_check_branch
      %37 = sbr.rel (0) target = $region13
    $region12: #{tpu_custom_call.1} parent=1 // pred_region
      %39 = dma.done [#allocation3], 256
    $region13: #{tpu_custom_call.1} parent=1 // pred_fallthru
      _
    // Predicated region
    $region14: #{tpu_custom_call.1} parent=1 // pred_check
      _
    $region15: #{tpu_custom_call.1} parent=1 // pred_check_branch
      %41 = sbr.rel (0) target = $region17
    $region16: #{tpu_custom_call.1} parent=1 // pred_region
      %43 = dma.done [#allocation6], 256
    $region17: #{tpu_custom_call.1} parent=1 // pred_fallthru
      _
    %v44 = vld [vmem:[#allocation2] sm:$0xff]
    %v45 = vld [vmem:[#allocation2 + $0x8] sm:$0xff]
    %v46 = vld [vmem:[#allocation5] sm:$0xff]
    %v47 = vld [vmem:[#allocation5 + $0x8] sm:$0xff]
    %v48 = vand.u32 2147483647, %v44
    %v49 = vand.u32 2147483647, %v45
    %v50 = vsub.f32 0.0, %v48
    %v51 = vsub.f32 0.0, %v49
    %v52 = vmul.f32 %v50, 1.442695
    %v53 = vpow.pop %v52
    %v54 = vmul.f32 %v51, 1.442695
    %v55 = vpow.pop %v54
    %v56 = vmax.f32 %v44, 0.0
    %v57 = vmax.f32 %v45, 0.0
    %v58 = vmul.f32 %v44, %v46
    %v59 = vmul.f32 %v45, %v47
    %v60 = vsub.f32 %v56, %v58
    %v61 = vsub.f32 %v57, %v59
    %v62 = vadd.f32 %v53, 1.0
    %v63 = vlog2.pop %v62
    %v64 = vmul.f32 %v63, 0.6931472
    %v65 = vmul.f32 -0.5, %v53
    %v66 = vadd.f32 %v65, 1.0
    %v67 = vmul.f32 %v66, %v53
    %v68 = vand.u32 2147483647, %v53
    %vm69 = vcmp.lt.f32.partialorder %v68, 0.0004427343
    %v70 = vsel %vm69, %v67, %v64
    %v71 = vadd.f32 %v55, 1.0
    %v72 = vlog2.pop %v71
    %v73 = vmul.f32 %v72, 0.6931472
    %v74 = vmul.f32 -0.5, %v55
    %v75 = vadd.f32 %v74, 1.0
    %v76 = vmul.f32 %v75, %v55
    %v77 = vand.u32 2147483647, %v55
    %vm78 = vcmp.lt.f32.partialorder %v77, 0.0004427343
    %v79 = vsel %vm78, %v76, %v73
    %v80 = vadd.f32 %v60, %v70
    %v81 = vadd.f32 %v61, %v79
    %v82 = vadd.f32 %v53, 1.0
    %v83 = vadd.f32 %v55, 1.0
    %v84 = vrcp.pop %v82
    %v85 = vmul.f32 %v82, %v84
    %v86 = vsub.f32 1.0, %v85
    %v87 = vmul.f32 %v84, %v86
    %v88 = vadd.f32 %v84, %v87
    %vm89 = vweird.f32 %v82
    %vm90 = vweird.f32 %v84
    %vm91 = vmor %vm89, %vm90
    %v92 = vsel %vm91, %v84, %v88
    %v93 = vand.u32 2147483647, %v82
    %vm94 = vcmp.eq.f32.partialorder %v93, 8.507059e+37
    %v95 = vand.u32 %v82, 2147483648
    %v96 = vor.u32 1.1754944e-38, %v95
    %v97 = vsel %vm94, %v96, %v92
    %v98 = vmul.f32 1.0, %v97
    %v99 = vrcp.pop %v83
    %v100 = vmul.f32 %v83, %v99
    %v101 = vsub.f32 1.0, %v100
    %v102 = vmul.f32 %v99, %v101
    %v103 = vadd.f32 %v99, %v102
    %vm104 = vweird.f32 %v83
    %vm105 = vweird.f32 %v99
    %vm106 = vmor %vm104, %vm105
    %v107 = vsel %vm106, %v99, %v103
    %v108 = vand.u32 2147483647, %v83
    %vm109 = vcmp.eq.f32.partialorder %v108, 8.507059e+37
    %v110 = vand.u32 %v83, 2147483648
    %v111 = vor.u32 1.1754944e-38, %v110
    %v112 = vsel %vm109, %v111, %v107
    %v113 = vmul.f32 1.0, %v112
    %v114 = vmul.f32 %v53, %v98
    %v115 = vmul.f32 %v55, %v113
    %vm116 = vcmp.ge.f32.partialorder %v44, 0.0
    %vm117 = vcmp.ge.f32.partialorder %v45, 0.0
    %v118 = vsel %vm116, %v98, %v114
    %v119 = vsel %vm117, %v113, %v115
    %v120 = vsel %vm116, %v114, %v98
    %v121 = vsel %vm117, %v115, %v113
    %vm122 = vcmp.eq.f32.partialorder %v46, 1.0
    %vm123 = vcmp.eq.f32.partialorder %v47, 1.0
    %v124 = vsel %vm122, %v120, %v118
    %v125 = vsel %vm123, %v121, %v119
    %v126 = vmul.f32 %v124, %v124
    %v127 = vmul.f32 %v125, %v125
    %v128 = vmul.f32 %v126, %v80
    %v129 = vmul.f32 %v127, %v81
    %vm130 = vcmask 261120
    %v131 = vsel %vm130, %v128, 0.0
    %v132 = vsel %vm130, %v129, 0.0
    %v133 = vadd.f32 %v131, %v132
    %134 = vadd.xlane.f32.xlu0 %v133
    %v135 = vpop.xlane.xlu0 %134
    %v136 = vrot.slane %v135, 4
    %v137 = vadd.f32 %v135, %v136
    %v138 = vrot.slane %v137, 2
    %v139 = vadd.f32 %v137, %v138
    %v140 = vrot.slane %v139, 1
    %v141 = vadd.f32 %v139, %v140
    %s142 = vtos %v141
    %v143 = vstv %s142
    %144 = vst [vmem:[#allocation7] sm:$0xff] %v143
    // Predicated region
    $region18: #{tpu_custom_call.1} parent=1 // pred_check
      _
    $region19: #{tpu_custom_call.1} parent=1 // pred_check_branch
      %146 = sbr.rel (0) target = $region21
    $region20: #{tpu_custom_call.1} parent=1 // pred_region
      %148 = vsyncadd [#allocation4], 0
      %s150 = sshll.u32 [#allocation7], 4
      %s151 = int_to_ptr.vmem [resolvable:$true] %s150
      %s152 = sshll.u32 %s2, 4
      %s153 = int_to_ptr.hbm [resolvable:$true] %s152
      %155 = dma.vmem_to_hbm [thread:$0]  %s151, 128, %s153, [#allocation4]
    $region21: #{tpu_custom_call.1} parent=1 // pred_fallthru
      _
    // Predicated region
    $region22: #{tpu_custom_call.1} parent=1 // pred_check
      _
    $region23: #{tpu_custom_call.1} parent=1 // pred_check_branch
      %157 = sbr.rel (0) target = $region25
    $region24: #{tpu_custom_call.1} parent=1 // pred_region
      %159 = dma.done [#allocation4], 128
    $region25: #{tpu_custom_call.1} parent=1 // pred_fallthru
      _
    %160 = vsyncpa [#allocation3], 1
    %161 = vsyncpa [#allocation6], 1
    %162 = vsyncpa [#allocation4], 1

</llo_original>
